<compile_context>
chip_gen: v7x
topology: tpu7x:2x2x1
jax: 0.10.0
libtpu: 0.0.40
codegen_flags: <defaults>
</compile_context>

<pallas_src>
import functools

import jax
import jax.numpy as jnp
import numpy as np
from jax.experimental import pallas as pl
from jax.experimental.pallas import tpu as pltpu


_NSPLIT = 2                      # leading "parallel" grid axis (both TCs on v7x; ~free elsewhere)
_VMEM_LIMIT = 32 * 1024 * 1024   # safe on v5e (128 MiB phys), v6e (128 MiB), v7x (64 MiB)


def _soft_dice_partial_kernel(preds_ref, targets_ref,
                              inter_out, psum_out, tsum_out,
                              inter_acc, psum_acc, tsum_acc):
    """preds_ref: (B, C, T) f32, targets_ref: (B, T) i32.
    Accumulates per-class partial inter/psum/tsum over HW tiles; emits (1, C, 1) per split."""
    i = pl.program_id(1)

    @pl.when(i == 0)
    def _():
        inter_acc[...] = jnp.zeros_like(inter_acc)
        psum_acc[...] = jnp.zeros_like(psum_acc)
        tsum_acc[...] = jnp.zeros_like(tsum_acc)

    p = preds_ref[...]            # (B, C, T) float32
    t = targets_ref[...]          # (B, T)    int32
    B, C, T = p.shape

    # Per-pixel sum over batch of preds: (C, T)
    psum_pix = jnp.sum(p, axis=0)

    # Per-pixel per-class target count WITHOUT materializing a (B, C, T) one-hot:
    # unrolled loop over the (small) batch against a 2-D class iota.
    cls_iota = jax.lax.broadcasted_iota(jnp.int32, (C, T), 0)
    tsum_pix = jnp.zeros((C, T), jnp.float32)
    for b in range(B):            # B is small and static
        tsum_pix = tsum_pix + (t[b:b + 1, :] == cls_iota).astype(jnp.float32)

    # PyTorch broadcast quirk (B,1,H,W)*(B,H,W)->(B,B,H,W) means
    # intersection = sum_hw (sum_b target)*(sum_b pred): batch-summed BEFORE the product.
    inter_acc[...] += jnp.sum(tsum_pix * psum_pix, axis=1, keepdims=True)   # (C, 1)
    psum_acc[...] += jnp.sum(psum_pix, axis=1, keepdims=True)               # (C, 1)
    tsum_acc[...] += jnp.sum(tsum_pix, axis=1, keepdims=True)               # (C, 1)

    @pl.when(i == pl.num_programs(1) - 1)
    def _():
        inter_out[...] = inter_acc[...][None, :, :]
        psum_out[...] = psum_acc[...][None, :, :]
        tsum_out[...] = tsum_acc[...][None, :, :]


def _max_hw_tile(b, c, budget_bytes=8 * 1024 * 1024, cap=8192):
    # Double-buffered f32 preds + i32 targets streams plus ~3 (C, T) f32 temporaries.
    bytes_per_lane = 4 * (2 * b * (c + 1) + 3 * c)
    mt = min(budget_bytes // bytes_per_lane, cap)
    return max(128, (mt // 128) * 128)


def _choose_hw_tile(hw_split, max_tile):
    """Largest multiple of 128 dividing hw_split (itself a multiple of 128), <= max_tile."""
    m = hw_split // 128
    best, d = 1, 1
    while d * d <= m:
        if m % d == 0:
            for cand in (d, m // d):
                if cand > best and cand * 128 <= max_tile:
                    best = cand
        d += 1
    return best * 128


@functools.partial(jax.jit, static_argnums=(2, 3))
def soft_dice_loss(preds, targets, num_classes, eps=1e-5):
    """preds: (B, num_classes, H, W) float, targets: (B, 1, H, W) int. Returns f32 scalar."""
    B, C, H, W = preds.shape
    assert C == num_classes
    HW = H * W

    # Free layout changes only: keep NCHW, flatten the spatial dims (no host transpose).
    preds_k = preds.reshape(B, C, HW).astype(jnp.float32)
    targets_k = targets.reshape(B, HW).astype(jnp.int32)
    # TODO(synk): optional bandwidth win: stream preds as bf16 / targets as int8 and upcast
    #             in-kernel; kept f32/i32 so the result matches the f32 reference tightly.

    # Pad HW minimally so it splits into NSPLIT halves of 128-multiples.
    pad_unit = _NSPLIT * 128
    pad = (-HW) % pad_unit
    if pad:
        preds_k = jnp.pad(preds_k, ((0, 0), (0, 0), (0, pad)))                      # zeros
        targets_k = jnp.pad(targets_k, ((0, 0), (0, pad)), constant_values=num_classes)
    hw_pad = HW + pad
    hw_split = hw_pad // _NSPLIT
    tile = _choose_hw_tile(hw_split, _max_hw_tile(B, C))
    n_tiles = hw_split // tile

    part_shape = jax.ShapeDtypeStruct((_NSPLIT, C, 1), jnp.float32)
    part_spec = pl.BlockSpec((1, C, 1), lambda s, i: (s, 0, 0))

    inter_p, psum_p, tsum_p = pl.pallas_call(
        _soft_dice_partial_kernel,
        out_shape=(part_shape, part_shape, part_shape),
        grid_spec=pltpu.PrefetchScalarGridSpec(
            num_scalar_prefetch=0,
            grid=(_NSPLIT, n_tiles),
            in_specs=[
                pl.BlockSpec((B, C, tile), lambda s, i: (0, 0, s * n_tiles + i)),  # preds
                pl.BlockSpec((B, tile), lambda s, i: (0, s * n_tiles + i)),        # targets
            ],
            out_specs=[part_spec, part_spec, part_spec],
            scratch_shapes=[
                pltpu.VMEM((C, 1), jnp.float32),
                pltpu.VMEM((C, 1), jnp.float32),
                pltpu.VMEM((C, 1), jnp.float32),
            ],
        ),
        compiler_params=pltpu.CompilerParams(
            dimension_semantics=("parallel", "arbitrary"),
            vmem_limit_bytes=_VMEM_LIMIT,
        ),
    )(preds_k, targets_k)

    # O(C) epilogue, run exactly once (fused into this jit): combine the split partials,
    # add eps ONCE, take dice / -log, apply the class weights induced by the in-loop
    # division by num_classes: weight_c = C ** (c - C).
    inter = jnp.sum(inter_p[:, :, 0], axis=0)   # (C,)
    psum = jnp.sum(psum_p[:, :, 0], axis=0)     # (C,)
    tsum = jnp.sum(tsum_p[:, :, 0], axis=0)     # (C,)

    dice = (2.0 * inter + eps) / (psum + tsum + eps)
    weights = jnp.float32(num_classes) ** (
        jnp.arange(num_classes, dtype=jnp.float32) - jnp.float32(num_classes)
    )
    return jnp.sum(-jnp.log(dice) * weights)


def _reference_loss(preds, targets, num_classes, eps=1e-5):
    """Pure-JAX transliteration of the PyTorch forward (same broadcasting quirk)."""
    loss = jnp.float32(0.0)
    for cls in range(num_classes):
        target = (targets == cls).astype(jnp.float32)   # (B, 1, H, W)
        pred = preds[:, cls]                            # (B, H, W)
        intersection = jnp.sum(pred * target)           # broadcasts to (B, B, H, W)
        dice = (2.0 * intersection + eps) / (jnp.sum(pred) + jnp.sum(target) + eps)
        loss = loss - jnp.log(dice)
        loss = loss / num_classes
    return loss


if __name__ == "__main__":
    B, num_classes, H, W = 2, 4, 16, 16
    eps = 1e-5

    key = jax.random.PRNGKey(0)
    k_pred, k_tgt = jax.random.split(key)
    preds = jax.nn.softmax(
        jax.random.normal(k_pred, (B, num_classes, H, W), dtype=jnp.float32), axis=1
    )
    targets = jax.random.randint(k_tgt, (B, 1, H, W), 0, num_classes, dtype=jnp.int32)

    loss = soft_dice_loss(preds, targets, num_classes, eps)
    loss = jax.block_until_ready(loss)

    ref = jax.block_until_ready(_reference_loss(preds, targets, num_classes, eps))
    np.testing.assert_allclose(np.asarray(loss), np.asarray(ref), rtol=1e-4, atol=1e-6)

    print("KERNEL_OK")
</pallas_src>

<mosaic_0001>
module attributes {stable_mosaic.version = 11 : i64} {
  func.func @_soft_dice_partial_kernel(%arg0: i32, %arg1: i32, %arg2: memref<2x4x128xf32, #tpu.memory_space<vmem>>, %arg3: memref<2x128xi32, #tpu.memory_space<vmem>>, %arg4: memref<1x4x1xf32, #tpu.memory_space<vmem>>, %arg5: memref<1x4x1xf32, #tpu.memory_space<vmem>>, %arg6: memref<1x4x1xf32, #tpu.memory_space<vmem>>, %arg7: memref<4x1xf32, #tpu.memory_space<vmem>>, %arg8: memref<4x1xf32, #tpu.memory_space<vmem>>, %arg9: memref<4x1xf32, #tpu.memory_space<vmem>>) attributes {dimension_semantics = [#tpu.dimension_semantics<parallel>, #tpu.dimension_semantics<arbitrary>], iteration_bounds = array<i64: 2, 1>, scalar_prefetch = 0 : i64, scratch_operands = 3 : i64, tpu.core_type = #tpu.core_type<tc>, window_params = [{transform_indices = @transform_0, window_bounds = array<i64: 2, 4, 128>}, {transform_indices = @transform_1, window_bounds = array<i64: 2, 128>}, {transform_indices = @transform_2, window_bounds = array<i64: 1, 4, 1>}, {transform_indices = @transform_3, window_bounds = array<i64: 1, 4, 1>}, {transform_indices = @transform_4, window_bounds = array<i64: 1, 4, 1>}]} {
    %c0_i32 = arith.constant 0 : i32
    %0 = arith.cmpi eq, %arg1, %c0_i32 : i32
    %1 = arith.extui %0 : i1 to i32
    %c0_i32_0 = arith.constant 0 : i32
    %2 = arith.cmpi ne, %1, %c0_i32_0 : i32
    scf.if %2 {
      %cst_23 = arith.constant 0.000000e+00 : f32
      %39 = vector.broadcast %cst_23 : f32 to vector<4x1xf32>
      %c0_24 = arith.constant 0 : index
      %c0_25 = arith.constant 0 : index
      %40 = vector.load %arg7[%c0_24, %c0_25] : memref<4x1xf32, #tpu.memory_space<vmem>>, vector<4x1xf32>
      tpu.vector_store %arg7[%c0_24, %c0_25], %39 {strides = array<i32>} : memref<4x1xf32, #tpu.memory_space<vmem>>, vector<4x1xf32>,
      %cst_26 = arith.constant 0.000000e+00 : f32
      %41 = vector.broadcast %cst_26 : f32 to vector<4x1xf32>
      %c0_27 = arith.constant 0 : index
      %c0_28 = arith.constant 0 : index
      %42 = vector.load %arg8[%c0_27, %c0_28] : memref<4x1xf32, #tpu.memory_space<vmem>>, vector<4x1xf32>
      tpu.vector_store %arg8[%c0_27, %c0_28], %41 {strides = array<i32>} : memref<4x1xf32, #tpu.memory_space<vmem>>, vector<4x1xf32>,
      %cst_29 = arith.constant 0.000000e+00 : f32
      %43 = vector.broadcast %cst_29 : f32 to vector<4x1xf32>
      %c0_30 = arith.constant 0 : index
      %c0_31 = arith.constant 0 : index
      %44 = vector.load %arg9[%c0_30, %c0_31] : memref<4x1xf32, #tpu.memory_space<vmem>>, vector<4x1xf32>
      tpu.vector_store %arg9[%c0_30, %c0_31], %43 {strides = array<i32>} : memref<4x1xf32, #tpu.memory_space<vmem>>, vector<4x1xf32>,
    } else {
    }
    %c0 = arith.constant 0 : index
    %c0_1 = arith.constant 0 : index
    %c0_2 = arith.constant 0 : index
    %3 = vector.load %arg2[%c0, %c0_1, %c0_2] : memref<2x4x128xf32, #tpu.memory_space<vmem>>, vector<2x4x128xf32>
    %c0_3 = arith.constant 0 : index
    %c0_4 = arith.constant 0 : index
    %4 = vector.load %arg3[%c0_3, %c0_4] : memref<2x128xi32, #tpu.memory_space<vmem>>, vector<2x128xi32>
    %cst = arith.constant dense<0.000000e+00> : vector<4x128xf32>
    %5 = vector.multi_reduction <add>, %3, %cst [0] : vector<2x4x128xf32> to vector<4x128xf32>
    %6 = tpu.iota {dimensions = array<i32: 0>} : vector<4x128xi32>
    %cst_5 = arith.constant 0.000000e+00 : f32
    %7 = vector.broadcast %cst_5 : f32 to vector<4x128xf32>
    %8 = vector.extract_strided_slice %4 {offsets = [0, 0], sizes = [1, 128], strides = [1, 1]} : vector<2x128xi32> to vector<1x128xi32>
    %9 = vector.broadcast %8 : vector<1x128xi32> to vector<4x128xi32>
    %10 = arith.cmpi eq, %9, %6 : vector<4x128xi32>
    %11 = arith.extui %10 : vector<4x128xi1> to vector<4x128xi32>
    %12 = arith.sitofp %11 : vector<4x128xi32> to vector<4x128xf32>
    %13 = arith.addf %7, %12 : vector<4x128xf32>
    %14 = vector.extract_strided_slice %4 {offsets = [1, 0], sizes = [1, 128], strides = [1, 1]} : vector<2x128xi32> to vector<1x128xi32>
    %15 = vector.broadcast %14 : vector<1x128xi32> to vector<4x128xi32>
    %16 = arith.cmpi eq, %15, %6 : vector<4x128xi32>
    %17 = arith.extui %16 : vector<4x128xi1> to vector<4x128xi32>
    %18 = arith.sitofp %17 : vector<4x128xi32> to vector<4x128xf32>
    %19 = arith.addf %13, %18 : vector<4x128xf32>
    %c0_6 = arith.constant 0 : index
    %c0_7 = arith.constant 0 : index
    %20 = vector.load %arg7[%c0_6, %c0_7] : memref<4x1xf32, #tpu.memory_space<vmem>>, vector<4x1xf32>
    %21 = arith.mulf %19, %5 : vector<4x128xf32>
    %cst_8 = arith.constant dense<0.000000e+00> : vector<4xf32>
    %22 = vector.multi_reduction <add>, %21, %cst_8 [1] : vector<4x128xf32> to vector<4xf32>
    %23 = vector.shape_cast %22 : vector<4xf32> to vector<4x1xf32>
    %24 = arith.addf %20, %23 : vector<4x1xf32>
    %c0_9 = arith.constant 0 : index
    %c0_10 = arith.constant 0 : index
    %25 = vector.load %arg7[%c0_9, %c0_10] : memref<4x1xf32, #tpu.memory_space<vmem>>, vector<4x1xf32>
    tpu.vector_store %arg7[%c0_9, %c0_10], %24 {strides = array<i32>} : memref<4x1xf32, #tpu.memory_space<vmem>>, vector<4x1xf32>,
    %c0_11 = arith.constant 0 : index
    %c0_12 = arith.constant 0 : index
    %26 = vector.load %arg8[%c0_11, %c0_12] : memref<4x1xf32, #tpu.memory_space<vmem>>, vector<4x1xf32>
    %cst_13 = arith.constant dense<0.000000e+00> : vector<4xf32>
    %27 = vector.multi_reduction <add>, %5, %cst_13 [1] : vector<4x128xf32> to vector<4xf32>
    %28 = vector.shape_cast %27 : vector<4xf32> to vector<4x1xf32>
    %29 = arith.addf %26, %28 : vector<4x1xf32>
    %c0_14 = arith.constant 0 : index
    %c0_15 = arith.constant 0 : index
    %30 = vector.load %arg8[%c0_14, %c0_15] : memref<4x1xf32, #tpu.memory_space<vmem>>, vector<4x1xf32>
    tpu.vector_store %arg8[%c0_14, %c0_15], %29 {strides = array<i32>} : memref<4x1xf32, #tpu.memory_space<vmem>>, vector<4x1xf32>,
    %c0_16 = arith.constant 0 : index
    %c0_17 = arith.constant 0 : index
    %31 = vector.load %arg9[%c0_16, %c0_17] : memref<4x1xf32, #tpu.memory_space<vmem>>, vector<4x1xf32>
    %cst_18 = arith.constant dense<0.000000e+00> : vector<4xf32>
    %32 = vector.multi_reduction <add>, %19, %cst_18 [1] : vector<4x128xf32> to vector<4xf32>
    %33 = vector.shape_cast %32 : vector<4xf32> to vector<4x1xf32>
    %34 = arith.addf %31, %33 : vector<4x1xf32>
    %c0_19 = arith.constant 0 : index
    %c0_20 = arith.constant 0 : index
    %35 = vector.load %arg9[%c0_19, %c0_20] : memref<4x1xf32, #tpu.memory_space<vmem>>, vector<4x1xf32>
    tpu.vector_store %arg9[%c0_19, %c0_20], %34 {strides = array<i32>} : memref<4x1xf32, #tpu.memory_space<vmem>>, vector<4x1xf32>,
    %c0_i32_21 = arith.constant 0 : i32
    %36 = arith.cmpi eq, %arg1, %c0_i32_21 : i32
    %37 = arith.extui %36 : i1 to i32
    %c0_i32_22 = arith.constant 0 : i32
    %38 = arith.cmpi ne, %37, %c0_i32_22 : i32
    scf.if %38 {
      %c0_23 = arith.constant 0 : index
      %c0_24 = arith.constant 0 : index
      %39 = vector.load %arg7[%c0_23, %c0_24] : memref<4x1xf32, #tpu.memory_space<vmem>>, vector<4x1xf32>
      %40 = vector.shape_cast %39 : vector<4x1xf32> to vector<1x4x1xf32>
      %c0_25 = arith.constant 0 : index
      %c0_26 = arith.constant 0 : index
      %c0_27 = arith.constant 0 : index
      %41 = vector.load %arg4[%c0_25, %c0_26, %c0_27] : memref<1x4x1xf32, #tpu.memory_space<vmem>>, vector<1x4x1xf32>
      tpu.vector_store %arg4[%c0_25, %c0_26, %c0_27], %40 {strides = array<i32>} : memref<1x4x1xf32, #tpu.memory_space<vmem>>, vector<1x4x1xf32>,
      %c0_28 = arith.constant 0 : index
      %c0_29 = arith.constant 0 : index
      %42 = vector.load %arg8[%c0_28, %c0_29] : memref<4x1xf32, #tpu.memory_space<vmem>>, vector<4x1xf32>
      %43 = vector.shape_cast %42 : vector<4x1xf32> to vector<1x4x1xf32>
      %c0_30 = arith.constant 0 : index
      %c0_31 = arith.constant 0 : index
      %c0_32 = arith.constant 0 : index
      %44 = vector.load %arg5[%c0_30, %c0_31, %c0_32] : memref<1x4x1xf32, #tpu.memory_space<vmem>>, vector<1x4x1xf32>
      tpu.vector_store %arg5[%c0_30, %c0_31, %c0_32], %43 {strides = array<i32>} : memref<1x4x1xf32, #tpu.memory_space<vmem>>, vector<1x4x1xf32>,
      %c0_33 = arith.constant 0 : index
      %c0_34 = arith.constant 0 : index
      %45 = vector.load %arg9[%c0_33, %c0_34] : memref<4x1xf32, #tpu.memory_space<vmem>>, vector<4x1xf32>
      %46 = vector.shape_cast %45 : vector<4x1xf32> to vector<1x4x1xf32>
      %c0_35 = arith.constant 0 : index
      %c0_36 = arith.constant 0 : index
      %c0_37 = arith.constant 0 : index
      %47 = vector.load %arg6[%c0_35, %c0_36, %c0_37] : memref<1x4x1xf32, #tpu.memory_space<vmem>>, vector<1x4x1xf32>
      tpu.vector_store %arg6[%c0_35, %c0_36, %c0_37], %46 {strides = array<i32>} : memref<1x4x1xf32, #tpu.memory_space<vmem>>, vector<1x4x1xf32>,
    } else {
    }
    return
  }
  func.func @transform_0(%arg0: i32, %arg1: i32) -> (i32, i32, i32) {
    %c1_i32 = arith.constant 1 : i32
    %0 = arith.muli %arg0, %c1_i32 : i32
    %1 = arith.addi %0, %arg1 : i32
    %c0_i32 = arith.constant 0 : i32
    %c0_i32_0 = arith.constant 0 : i32
    %c0_i32_1 = arith.constant 0 : i32
    return %c0_i32, %c0_i32_0, %1 : i32, i32, i32
  }
  func.func @transform_1(%arg0: i32, %arg1: i32) -> (i32, i32) {
    %c1_i32 = arith.constant 1 : i32
    %0 = arith.muli %arg0, %c1_i32 : i32
    %1 = arith.addi %0, %arg1 : i32
    %c0_i32 = arith.constant 0 : i32
    %c0_i32_0 = arith.constant 0 : i32
    return %c0_i32, %1 : i32, i32
  }
  func.func @transform_2(%arg0: i32, %arg1: i32) -> (i32, i32, i32) {
    %c0_i32 = arith.constant 0 : i32
    %c0_i32_0 = arith.constant 0 : i32
    %c0_i32_1 = arith.constant 0 : i32
    return %arg0, %c0_i32, %c0_i32_0 : i32, i32, i32
  }
  func.func @transform_3(%arg0: i32, %arg1: i32) -> (i32, i32, i32) {
    %c0_i32 = arith.constant 0 : i32
    %c0_i32_0 = arith.constant 0 : i32
    %c0_i32_1 = arith.constant 0 : i32
    return %arg0, %c0_i32, %c0_i32_0 : i32, i32, i32
  }
  func.func @transform_4(%arg0: i32, %arg1: i32) -> (i32, i32, i32) {
    %c0_i32 = arith.constant 0 : i32
    %c0_i32_0 = arith.constant 0 : i32
    %c0_i32_1 = arith.constant 0 : i32
    return %arg0, %c0_i32, %c0_i32_0 : i32, i32, i32
  }
}

</mosaic_0001>

<llo_original>
// kernel: soft_dice_loss.1
$region0: #{soft_dice_loss.1}
  #allocation0 [shape = 'u32[]', space=smem, size = 0x4, offset = 0x4, fixed_abs, tag = 'smem constant byte address 0x4 - core index']
  #allocation1 [shape = 'u32[144,128]{1,0:T(1,128)}', space=vmem, size = 0x12000, scoped, tag = 'internal scratch']
  #allocation2 [shape = 'f32[4,1]{1,0:T(4,128)}', space=vmem, size = 0x800, scoped, tag = 'scratch operand']
  #allocation3 [shape = 'f32[4,1]{1,0:T(4,128)}', space=vmem, size = 0x800, scoped, tag = 'scratch operand']
  #allocation4 [shape = 'f32[4,1]{1,0:T(4,128)}', space=vmem, size = 0x800, scoped, tag = 'scratch operand']
  %s0 = inlined_call_operand.vmem [shape: f32[2,4,256], index: 0, kind: input, shape index: {}]
  %s1 = inlined_call_operand.vmem [shape: s32[2,256], index: 1, kind: input, shape index: {}]
  %s2 = inlined_call_operand.vmem [shape: f32[2,4,1], index: 2, kind: output, shape index: {0}]
  %s3 = inlined_call_operand.vmem [shape: f32[2,4,1], index: 3, kind: output, shape index: {1}]
  %s4 = inlined_call_operand.vmem [shape: f32[2,4,1], index: 4, kind: output, shape index: {2}]
  %5 = xla_tuple %s2, %s3, %s4
  %s6 = sld [smem:[#allocation0]]
  $region106: #{soft_dice_loss.1} parent=0
    _
  %s8 = ssub.s32 1, %s6
  %s9 = scalar_select 0, %s8, %s6
  $region1: #{soft_dice_loss.1} parent=0
    #allocation5 [shape = 'u8[8192]{0}', space=vmem, size = 0x2000, scoped, tag = 'input window, operand 0']
    loop: start=0, step=1, limit=4
    $region2: #{soft_dice_loss.1} parent=1 // loop_pre_header
      _
    $region3: #{soft_dice_loss.1} parent=1 // loop_header
      %s11 = sphi 0, %s15
      %p12 = scmp.ge.s32.totalorder %s11, 4
      %s18 = sphi 0, %s30
      %s19 = sphi 0, %s26
      %s20 = sphi 0, %s18
      %s21 = sphi 0, %s19
      %s22 = sphi 0, %s20
      %s23 = sphi 0, %s21
      %s35 = sphi 0, %s37
      %s38 = sphi 0, %s35
      %s39 = sphi 0, %s38
      %s55 = sphi 0, %s39
      %s63 = sphi 0, %s65
      %s66 = sphi 0, %s63
      %s67 = sphi 0, %s66
      %s83 = sphi 0, %s67
      %s89 = sphi 0, %s91
      %s92 = sphi 0, %s89
      %s93 = sphi 0, %s92
      %s109 = sphi 0, %s93
      %s115 = sphi 0, %s117
      %s118 = sphi 0, %s115
      %s119 = sphi 0, %s118
      %s135 = sphi 0, %s119
      %s141 = sphi 0, %s143
      %s144 = sphi 0, %s141
      %s145 = sphi 0, %s144
      %s161 = sphi 0, %s145
    $region4: #{soft_dice_loss.1} parent=1 // loop_header_branch
      %14 = sbr.rel (%p12) target = $region8
    $region5: #{soft_dice_loss.1} parent=1 // loop_body
      %s16 = ssub.s32 %s11, 1
      %s17 = ssub.s32 %s11, 2
      %s24 = sadd.s32 1, %s19
      %p25 = scmp.ge.s32.totalorder %s24, 1
      %s26 = scalar_select %p25, 0, %s24
      %s27 = sadd.s32 1, %s18
      %s28 = scalar_select %p25, %s27, %s18
      %p29 = scmp.ge.s32.totalorder %s28, 2
      %s30 = scalar_select %p29, 0, %s28
      %s31 = sadd.s32 %s18, %s19
      %s32 = sadd.s32 %s30, %s26
      %s33 = ssub.s32 %s31, %s32
      %p34 = scmp.eq.s32.totalorder %s33, 0
      %s36 = sadd.s32 %s35, 1
      %s37 = scalar_select %p34, %s35, %s36
      %p40 = pneg %p34
      %p41 = scmp.eq.s32.totalorder %s11, 1
      %p42 = por %p40, %p41
      %p43 = scmp.ne.s32.totalorder %s35, %s38
      %p44 = scmp.eq.s32.totalorder %s11, 0
      %p45 = por %p43, %p44
      %p46 = scmp.ne.s32.totalorder %s35, %s38
      %p47 = scmp.eq.s32.totalorder %s16, 1
      %p48 = por %p46, %p47
      %p49 = scmp.ne.s32.totalorder %s38, %s39
      %p50 = scmp.eq.s32.totalorder %s16, 0
      %p51 = por %p49, %p50
      %p52 = scmp.ne.s32.totalorder %s38, %s39
      %p53 = scmp.eq.s32.totalorder %s17, 1
      %p54 = por %p52, %p53
      %p56 = scmp.ne.s32.totalorder %s39, %s55
      %p57 = scmp.eq.s32.totalorder %s17, 0
      %p58 = por %p56, %p57
      %s59 = sadd.s32 %s18, %s19
      %s60 = sadd.s32 %s30, %s26
      %s61 = ssub.s32 %s59, %s60
      %p62 = scmp.eq.s32.totalorder %s61, 0
      %s64 = sadd.s32 %s63, 1
      %s65 = scalar_select %p62, %s63, %s64
      %p68 = pneg %p62
      %p69 = scmp.eq.s32.totalorder %s11, 1
      %p70 = por %p68, %p69
      %p71 = scmp.ne.s32.totalorder %s63, %s66
      %p72 = scmp.eq.s32.totalorder %s11, 0
      %p73 = por %p71, %p72
      %p74 = scmp.ne.s32.totalorder %s63, %s66
      %p75 = scmp.eq.s32.totalorder %s16, 1
      %p76 = por %p74, %p75
      %p77 = scmp.ne.s32.totalorder %s66, %s67
      %p78 = scmp.eq.s32.totalorder %s16, 0
      %p79 = por %p77, %p78
      %p80 = scmp.ne.s32.totalorder %s66, %s67
      %p81 = scmp.eq.s32.totalorder %s17, 1
      %p82 = por %p80, %p81
      %p84 = scmp.ne.s32.totalorder %s67, %s83
      %p85 = scmp.eq.s32.totalorder %s17, 0
      %p86 = por %p84, %p85
      %s87 = ssub.s32 %s18, %s30
      %p88 = scmp.eq.s32.totalorder %s87, 0
      %s90 = sadd.s32 %s89, 1
      %s91 = scalar_select %p88, %s89, %s90
      %p94 = pneg %p88
      %p95 = scmp.eq.s32.totalorder %s11, 1
      %p96 = por %p94, %p95
      %p97 = scmp.ne.s32.totalorder %s89, %s92
      %p98 = scmp.eq.s32.totalorder %s11, 0
      %p99 = por %p97, %p98
      %p100 = scmp.ne.s32.totalorder %s89, %s92
      %p101 = scmp.eq.s32.totalorder %s16, 1
      %p102 = por %p100, %p101
      %p103 = scmp.ne.s32.totalorder %s92, %s93
      %p104 = scmp.eq.s32.totalorder %s16, 0
      %p105 = por %p103, %p104
      %p106 = scmp.ne.s32.totalorder %s92, %s93
      %p107 = scmp.eq.s32.totalorder %s17, 1
      %p108 = por %p106, %p107
      %p110 = scmp.ne.s32.totalorder %s93, %s109
      %p111 = scmp.eq.s32.totalorder %s17, 0
      %p112 = por %p110, %p111
      %s113 = ssub.s32 %s18, %s30
      %p114 = scmp.eq.s32.totalorder %s113, 0
      %s116 = sadd.s32 %s115, 1
      %s117 = scalar_select %p114, %s115, %s116
      %p120 = pneg %p114
      %p121 = scmp.eq.s32.totalorder %s11, 1
      %p122 = por %p120, %p121
      %p123 = scmp.ne.s32.totalorder %s115, %s118
      %p124 = scmp.eq.s32.totalorder %s11, 0
      %p125 = por %p123, %p124
      %p126 = scmp.ne.s32.totalorder %s115, %s118
      %p127 = scmp.eq.s32.totalorder %s16, 1
      %p128 = por %p126, %p127
      %p129 = scmp.ne.s32.totalorder %s118, %s119
      %p130 = scmp.eq.s32.totalorder %s16, 0
      %p131 = por %p129, %p130
      %p132 = scmp.ne.s32.totalorder %s118, %s119
      %p133 = scmp.eq.s32.totalorder %s17, 1
      %p134 = por %p132, %p133
      %p136 = scmp.ne.s32.totalorder %s119, %s135
      %p137 = scmp.eq.s32.totalorder %s17, 0
      %p138 = por %p136, %p137
      %s139 = ssub.s32 %s18, %s30
      %p140 = scmp.eq.s32.totalorder %s139, 0
      %s142 = sadd.s32 %s141, 1
      %s143 = scalar_select %p140, %s141, %s142
      %p146 = pneg %p140
      %p147 = scmp.eq.s32.totalorder %s11, 1
      %p148 = por %p146, %p147
      %p149 = scmp.ne.s32.totalorder %s141, %s144
      %p150 = scmp.eq.s32.totalorder %s11, 0
      %p151 = por %p149, %p150
      %p152 = scmp.ne.s32.totalorder %s141, %s144
      %p153 = scmp.eq.s32.totalorder %s16, 1
      %p154 = por %p152, %p153
      %p155 = scmp.ne.s32.totalorder %s144, %s145
      %p156 = scmp.eq.s32.totalorder %s16, 0
      %p157 = por %p155, %p156
      %p158 = scmp.ne.s32.totalorder %s144, %s145
      %p159 = scmp.eq.s32.totalorder %s17, 1
      %p160 = por %p158, %p159
      %p162 = scmp.ne.s32.totalorder %s145, %s161
      %p163 = scmp.eq.s32.totalorder %s17, 0
      %p164 = por %p162, %p163
      %p165 = scmp.le.s32.totalorder 1, %s11
      %p166 = scmp.lt.s32.totalorder %s11, 3
      %p167 = pnand %p165, %p166
      %p168 = pneg %p167
      // Predicated region
      $region9: #{soft_dice_loss.1} parent=5 // pred_check
        _
      $region10: #{soft_dice_loss.1} parent=5 // pred_check_branch
        %170 = sbr.rel (%p167) target = $region12
      $region11: #{soft_dice_loss.1} parent=5 // pred_region
        %s171 = ssub.s32 %s11, 1
      $region12: #{soft_dice_loss.1} parent=5 // pred_fallthru
        _
      %p172 = scmp.lt.s32.totalorder %s11, 2
      // Predicated region
      $region13: #{soft_dice_loss.1} parent=5 // pred_check
        %p173 = pneg %p172
      $region14: #{soft_dice_loss.1} parent=5 // pred_check_branch
        %175 = sbr.rel (%p173) target = $region16
      $region15: #{soft_dice_loss.1} parent=5 // pred_region
        // Predicated region
        $region17: #{soft_dice_loss.1} parent=15 // pred_check
          %p176 = pneg %p45
        $region18: #{soft_dice_loss.1} parent=15 // pred_check_branch
          %178 = sbr.rel (%p176) target = $region20
        $region19: #{soft_dice_loss.1} parent=15 // pred_region
          %s179 = sand.u32 %s35, 1
          %s180 = sand.u32 %s35, 1
          %s181 = smul.addr %s180, 8
          %s182 = scalar_lea.vmem [#allocation5], %s181
          %s183 = sadd.s32 %s18, %s19
          %s184 = smul.addr %s183, 4
          %s185 = scalar_lea.vmem %s0, %s184
          // Predicated region
          $region21: #{soft_dice_loss.1} parent=19 // pred_check
            _
          $region22: #{soft_dice_loss.1} parent=19 // pred_check_branch
            %187 = sbr.rel (0) target = $region24
          $region23: #{soft_dice_loss.1} parent=19 // pred_region
            // Predicated region
            $region25: #{soft_dice_loss.1} parent=23 // pred_check
              _
            $region26: #{soft_dice_loss.1} parent=23 // pred_check_branch
              %189 = sbr.rel target = $region28
            $region27: #{soft_dice_loss.1} parent=23 // pred_region
              // Predicated region
              $region40: #{soft_dice_loss.1} parent=27 // pred_check
                _
              $region41: #{soft_dice_loss.1} parent=27 // pred_check_branch
                %206 = sbr.rel (0) target = $region43
              $region42: #{soft_dice_loss.1} parent=27 // pred_region
                loop: start=0, step=1, limit=1
                $region44: #{soft_dice_loss.1} parent=42 // loop_pre_header
                  _
                $region45: #{soft_dice_loss.1} parent=42 // loop_header
                  %s208 = sphi 0, %s212
                  %p209 = scmp.ge.s32.totalorder %s208, 1
                  %s213 = sphi %s185, %s185
                  %s214 = sphi %s182, %s182
                $region46: #{soft_dice_loss.1} parent=42 // loop_header_branch
                  %211 = sbr.rel (%p209) target = $region50
                $region47: #{soft_dice_loss.1} parent=42 // loop_body
                  _
                $region48: #{soft_dice_loss.1} parent=42 // loop_footer
                  %s212 = sadd.s32 1, %s208
                $region49: #{soft_dice_loss.1} parent=42 // loop_footer_branch
                  %207 = sbr.rel target = $region45
                $region50: #{soft_dice_loss.1} parent=42 // loop_exit
                  _
                loop: start=0, step=1, limit=1
                $region51: #{soft_dice_loss.1} parent=42 // loop_pre_header
                  _
                $region52: #{soft_dice_loss.1} parent=42 // loop_header
                  %s217 = sphi 0, %s221
                  %p218 = scmp.ge.s32.totalorder %s217, 1
                  %s222 = sphi %s185, %s185
                  %s223 = sphi %s182, %s182
                $region53: #{soft_dice_loss.1} parent=42 // loop_header_branch
                  %220 = sbr.rel (%p218) target = $region57
                $region54: #{soft_dice_loss.1} parent=42 // loop_body
                  %v224 = vld [vmem:[%s222] sm:$0xf]
                  %225 = vst [vmem:[%s223] sm:$0xf] %v224
                  %v226 = vld [vmem:[%s222 + $0x8] sm:$0xf]
                  %227 = vst [vmem:[%s223 + $0x4] sm:$0xf] %v226
                $region55: #{soft_dice_loss.1} parent=42 // loop_footer
                  %s221 = sadd.s32 1, %s217
                $region56: #{soft_dice_loss.1} parent=42 // loop_footer_branch
                  %216 = sbr.rel target = $region52
                $region57: #{soft_dice_loss.1} parent=42 // loop_exit
                  _
              $region43: #{soft_dice_loss.1} parent=27 // pred_fallthru
                _
            $region28: #{soft_dice_loss.1} parent=23 // pred_fallthru
              _
            // Predicated region
            $region29: #{soft_dice_loss.1} parent=23 // pred_check
              _
            $region30: #{soft_dice_loss.1} parent=23 // pred_check_branch
              %191 = sbr.rel (0) target = $region32
            $region31: #{soft_dice_loss.1} parent=23 // pred_region
              loop: start=0, step=1, limit=1
              $region33: #{soft_dice_loss.1} parent=31 // loop_pre_header
                _
              $region34: #{soft_dice_loss.1} parent=31 // loop_header
                %s194 = sphi 0, %s198
                %p195 = scmp.ge.s32.totalorder %s194, 1
                %s199 = sphi %s185, %s185
                %s200 = sphi %s182, %s182
              $region35: #{soft_dice_loss.1} parent=31 // loop_header_branch
                %197 = sbr.rel (%p195) target = $region39
              $region36: #{soft_dice_loss.1} parent=31 // loop_body
                %v201 = vld [vmem:[%s199] sm:$0xf]
                %202 = vst [vmem:[%s200] sm:$0xf] %v201
                %v203 = vld [vmem:[%s199 + $0x8] sm:$0xf]
                %204 = vst [vmem:[%s200 + $0x4] sm:$0xf] %v203
              $region37: #{soft_dice_loss.1} parent=31 // loop_footer
                %s198 = sadd.s32 1, %s194
              $region38: #{soft_dice_loss.1} parent=31 // loop_footer_branch
                %193 = sbr.rel target = $region34
              $region39: #{soft_dice_loss.1} parent=31 // loop_exit
                _
            $region32: #{soft_dice_loss.1} parent=23 // pred_fallthru
              _
          $region24: #{soft_dice_loss.1} parent=19 // pred_fallthru
            _
          %228 = vnop
        $region20: #{soft_dice_loss.1} parent=15 // pred_fallthru
          _
        // Predicated region
        $region58: #{soft_dice_loss.1} parent=15 // pred_check
          %p229 = pneg %p73
        $region59: #{soft_dice_loss.1} parent=15 // pred_check_branch
          %231 = sbr.rel (%p229) target = $region61
        $region60: #{soft_dice_loss.1} parent=15 // pred_region
          %s232 = sadd.s32 %s18, %s19
          %p233 = scmp.lt.s32.totalorder %s232, 1
          %s234 = scalar_select %p233, %s232, 1
          %s235 = smul.addr %s234, 2
          %s236 = scalar_lea.vmem %s1, %s235
          %s237 = sadd.s32 %s18, %s19
        $region61: #{soft_dice_loss.1} parent=15 // pred_fallthru
          _
      $region16: #{soft_dice_loss.1} parent=5 // pred_fallthru
        _
      %p238 = scmp.le.s32.totalorder 1, %s11
      %p239 = scmp.lt.s32.totalorder %s11, 3
      %p240 = pnand %p238, %p239
      %p241 = pneg %p240
      // Predicated region
      $region62: #{soft_dice_loss.1} parent=5 // pred_check
        _
      $region63: #{soft_dice_loss.1} parent=5 // pred_check_branch
        %243 = sbr.rel (%p240) target = $region65
      $region64: #{soft_dice_loss.1} parent=5 // pred_region
        %s244 = ssub.s32 %s11, 1
        %s245 = sand.u32 %s38, 1
        %s246 = sand.u32 %s38, 1
        %s247 = smul.addr %s246, 8
        %s248 = scalar_lea.vmem [#allocation5], %s247
        // Predicated region
        $region66: #{soft_dice_loss.1} parent=64 // pred_check
          %p249 = pneg %p51
        $region67: #{soft_dice_loss.1} parent=64 // pred_check_branch
          %251 = sbr.rel (%p249) target = $region69
        $region68: #{soft_dice_loss.1} parent=64 // pred_region
          _
        $region69: #{soft_dice_loss.1} parent=64 // pred_fallthru
          _
        %s252 = sand.u32 %s38, 1
        %s253 = sand.u32 %s38, 1
        %s254 = smul.addr %s253, 8
        %s255 = scalar_lea.vmem [#allocation5], %s254
        %p256 = pneg %p51
        %p257 = pneg %p48
        %s258 = sadd.s32 %s20, %s21
        %p259 = scmp.lt.s32.totalorder %s258, 1
        %s260 = scalar_select %p259, %s258, 1
        %s261 = smul.addr %s260, 2
        %s262 = scalar_lea.vmem %s1, %s261
        %p263 = pneg %p79
        %p264 = pneg %p76
        %p265 = pneg %p105
        %p266 = pneg %p102
        %p267 = scmp.lt.s32.totalorder %s20, 1
        %s268 = scalar_select %p267, %s20, 1
        %s269 = smul.addr %s268, 4
        %s270 = scalar_lea.vmem %s2, %s269
        %p271 = pneg %p131
        %p272 = pneg %p128
        %p273 = scmp.lt.s32.totalorder %s20, 1
        %s274 = scalar_select %p273, %s20, 1
        %s275 = smul.addr %s274, 4
        %s276 = scalar_lea.vmem %s3, %s275
        %p277 = pneg %p157
        %p278 = pneg %p154
        %p279 = scmp.lt.s32.totalorder %s20, 1
        %s280 = scalar_select %p279, %s20, 1
        %s281 = smul.addr %s280, 4
        %s282 = scalar_lea.vmem %s4, %s281
        %s283 = sadd.s32 %s20, %s21
        %s284 = sadd.s32 %s20, %s21
        %p285 = scmp.lt.s32.totalorder %s284, 1
        %s286 = scalar_select %p285, %s284, 1
        %s287 = smul.addr %s286, 2
        %s288 = scalar_lea.vmem %s1, %s287
        %s289 = sadd.s32 %s20, %s21
        %p290 = scmp.lt.s32.totalorder %s20, 1
        %s291 = scalar_select %p290, %s20, 1
        %s292 = smul.addr %s291, 4
        %s293 = scalar_lea.vmem %s2, %s292
        %p294 = scmp.lt.s32.totalorder %s20, 1
        %s295 = scalar_select %p294, %s20, 1
        %s296 = smul.addr %s295, 4
        %s297 = scalar_lea.vmem %s3, %s296
        %p298 = scmp.lt.s32.totalorder %s20, 1
        %s299 = scalar_select %p298, %s20, 1
        %s300 = smul.addr %s299, 4
        %s301 = scalar_lea.vmem %s4, %s300
        %p302 = scmp.eq.s32.totalorder %s21, 0
        // Predicated region
        $region70: #{soft_dice_loss.1} parent=64 // pred_check
          %p303 = pneg %p302
        $region71: #{soft_dice_loss.1} parent=64 // pred_check_branch
          %305 = sbr.rel (%p303) target = $region73
        $region72: #{soft_dice_loss.1} parent=64 // pred_region
          %vm306 = vcmask 3072
          %307 = vst.msk [vmem:[#allocation2] sm:$0xf] %vm306, 0.0
          %308 = vst.msk [vmem:[#allocation3] sm:$0xf] %vm306, 0.0
          %309 = vst.msk [vmem:[#allocation4] sm:$0xf] %vm306, 0.0
        $region73: #{soft_dice_loss.1} parent=64 // pred_fallthru
          _
        %v310 = vld [vmem:[%s248] sm:$0xf]
        %v311 = vld [vmem:[%s248 + $0x4] sm:$0xf]
        %v312 = vld [vmem:[%s288] sm:$0x3]
        %vm313 = vcmask 1043456
        %v314 = vsel %vm313, %v310, 0.0
        %v315 = vsel %vm313, %v311, 0.0
        %v316 = vadd.f32 %v314, %v315
        %v317 = vlaneseq
        %v318 = vshrl.u32 %v317, 7
        %v319 = vlaneseq
        %v320 = vshrl.u32 %v319, 7
        %v321 = vsub.s32 0, %v320
        %v322 = vrot.slane %v312, %v321
        %vm323 = vcmp.eq.s32.totalorder %v322, %v318
        %v324 = vsel %vm323, 1, 0
        %v325 = vcvt.s32.f32 %v324
        %v326 = vadd.f32 %v325, 0.0
        %v327 = vlaneseq
        %v328 = vshrl.u32 %v327, 7
        %v329 = vsub.s32 1, %v328
        %v330 = vrot.slane %v312, %v329
        %vm331 = vcmp.eq.s32.totalorder %v330, %v318
        %v332 = vsel %vm331, 1, 0
        %v333 = vcvt.s32.f32 %v332
        %v334 = vadd.f32 %v326, %v333
        %v335 = vld [vmem:[#allocation2] sm:$0xf]
        %v336 = vmul.f32 %v334, %v316
        %v337 = vsel %vm313, %v336, 0.0
        %338 = vadd.xlane.f32.xlu0 %v337
        %v339 = vpop.xlane.xlu0 %338
        %v340 = vadd.f32 %v335, %v339
        %vm341 = vcmask 3072
        %342 = vst.msk [vmem:[#allocation2] sm:$0xf] %vm341, %v340
        %v343 = vld [vmem:[#allocation3] sm:$0xf]
        %v344 = vsel %vm313, %v316, 0.0
        %345 = vadd.xlane.f32.xlu0 %v344
        %v346 = vpop.xlane.xlu0 %345
        %v347 = vadd.f32 %v343, %v346
        %348 = vst.msk [vmem:[#allocation3] sm:$0xf] %vm341, %v347
        %v349 = vld [vmem:[#allocation4] sm:$0xf]
        %v350 = vsel %vm313, %v334, 0.0
        %351 = vadd.xlane.f32.xlu0 %v350
        %v352 = vpop.xlane.xlu0 %351
        %v353 = vadd.f32 %v349, %v352
        %354 = vst.msk [vmem:[#allocation4] sm:$0xf] %vm341, %v353
        // Predicated region
        $region74: #{soft_dice_loss.1} parent=64 // pred_check
          %p355 = pneg %p302
        $region75: #{soft_dice_loss.1} parent=64 // pred_check_branch
          %357 = sbr.rel (%p355) target = $region77
        $region76: #{soft_dice_loss.1} parent=64 // pred_region
          %v358 = vld [vmem:[#allocation2] sm:$0xf]
          %359 = vst.msk [vmem:[%s293] sm:$0xf] %vm341, %v358
          %v360 = vld [vmem:[#allocation3] sm:$0xf]
          %361 = vst.msk [vmem:[%s297] sm:$0xf] %vm341, %v360
          %v362 = vld [vmem:[#allocation4] sm:$0xf]
          %363 = vst.msk [vmem:[%s301] sm:$0xf] %vm341, %v362
        $region77: #{soft_dice_loss.1} parent=64 // pred_fallthru
          _
        %p364 = scmp.lt.s32.totalorder %s20, 1
        %s365 = scalar_select %p364, %s20, 1
        %s366 = smul.addr %s365, 4
        %s367 = scalar_lea.vmem %s2, %s366
        %p368 = scmp.lt.s32.totalorder %s20, 1
        %s369 = scalar_select %p368, %s20, 1
        %s370 = smul.addr %s369, 4
        %s371 = scalar_lea.vmem %s3, %s370
        %p372 = scmp.lt.s32.totalorder %s20, 1
        %s373 = scalar_select %p372, %s20, 1
        %s374 = smul.addr %s373, 4
        %s375 = scalar_lea.vmem %s4, %s374
        // Predicated region
        $region78: #{soft_dice_loss.1} parent=64 // pred_check
          %p376 = pneg %p102
        $region79: #{soft_dice_loss.1} parent=64 // pred_check_branch
          %378 = sbr.rel (%p376) target = $region81
        $region80: #{soft_dice_loss.1} parent=64 // pred_region
          _
        $region81: #{soft_dice_loss.1} parent=64 // pred_fallthru
          _
        // Predicated region
        $region82: #{soft_dice_loss.1} parent=64 // pred_check
          %p379 = pneg %p128
        $region83: #{soft_dice_loss.1} parent=64 // pred_check_branch
          %381 = sbr.rel (%p379) target = $region85
        $region84: #{soft_dice_loss.1} parent=64 // pred_region
          _
        $region85: #{soft_dice_loss.1} parent=64 // pred_fallthru
          _
        // Predicated region
        $region86: #{soft_dice_loss.1} parent=64 // pred_check
          %p382 = pneg %p154
        $region87: #{soft_dice_loss.1} parent=64 // pred_check_branch
          %384 = sbr.rel (%p382) target = $region89
        $region88: #{soft_dice_loss.1} parent=64 // pred_region
          _
        $region89: #{soft_dice_loss.1} parent=64 // pred_fallthru
          _
      $region65: #{soft_dice_loss.1} parent=5 // pred_fallthru
        _
      %p385 = scmp.le.s32.totalorder 2, %s11
      // Predicated region
      $region90: #{soft_dice_loss.1} parent=5 // pred_check
        %p386 = pneg %p385
      $region91: #{soft_dice_loss.1} parent=5 // pred_check_branch
        %388 = sbr.rel (%p386) target = $region93
      $region92: #{soft_dice_loss.1} parent=5 // pred_region
        %s389 = ssub.s32 %s11, 2
        // Predicated region
        $region94: #{soft_dice_loss.1} parent=92 // pred_check
          %p390 = pneg %p108
        $region95: #{soft_dice_loss.1} parent=92 // pred_check_branch
          %392 = sbr.rel (%p390) target = $region97
        $region96: #{soft_dice_loss.1} parent=92 // pred_region
          %p393 = scmp.lt.s32.totalorder %s22, 1
          %s394 = scalar_select %p393, %s22, 1
          %s395 = smul.addr %s394, 4
          %s396 = scalar_lea.vmem %s2, %s395
        $region97: #{soft_dice_loss.1} parent=92 // pred_fallthru
          _
        // Predicated region
        $region98: #{soft_dice_loss.1} parent=92 // pred_check
          %p397 = pneg %p134
        $region99: #{soft_dice_loss.1} parent=92 // pred_check_branch
          %399 = sbr.rel (%p397) target = $region101
        $region100: #{soft_dice_loss.1} parent=92 // pred_region
          %p400 = scmp.lt.s32.totalorder %s22, 1
          %s401 = scalar_select %p400, %s22, 1
          %s402 = smul.addr %s401, 4
          %s403 = scalar_lea.vmem %s3, %s402
        $region101: #{soft_dice_loss.1} parent=92 // pred_fallthru
          _
        // Predicated region
        $region102: #{soft_dice_loss.1} parent=92 // pred_check
          %p404 = pneg %p160
        $region103: #{soft_dice_loss.1} parent=92 // pred_check_branch
          %406 = sbr.rel (%p404) target = $region105
        $region104: #{soft_dice_loss.1} parent=92 // pred_region
          %p407 = scmp.lt.s32.totalorder %s22, 1
          %s408 = scalar_select %p407, %s22, 1
          %s409 = smul.addr %s408, 4
          %s410 = scalar_lea.vmem %s4, %s409
        $region105: #{soft_dice_loss.1} parent=92 // pred_fallthru
          _
      $region93: #{soft_dice_loss.1} parent=5 // pred_fallthru
        _
    $region6: #{soft_dice_loss.1} parent=1 // loop_footer
      %s15 = sadd.s32 1, %s11
    $region7: #{soft_dice_loss.1} parent=1 // loop_footer_branch
      %10 = sbr.rel target = $region3
    $region8: #{soft_dice_loss.1} parent=1 // loop_exit
      _

</llo_original>
